<compile_context>
chip_gen: v7x
topology: tpu7x:2x2x1
jax: 0.10.0
libtpu: 0.0.40
codegen_flags: <defaults>
</compile_context>

<pallas_src>
import functools

import jax
import jax.numpy as jnp
from jax.experimental import pallas as pl
from jax.experimental.pallas import tpu as pltpu

_LANE = 128


def _mse_tile_kernel(pred_ref, mu_ref, sig_ref, out_ref, acc_ref, *,
                     block_rows, valid_rows, tiles_per_part, needs_mask):
    """One (block_rows, lanes) tile: accumulate sigma-normalized sq. errors."""
    p = pl.program_id(0)          # partition (parallel) axis
    j = pl.program_id(1)          # reduction (arbitrary) axis

    @pl.when(j == 0)
    def _init():
        acc_ref[...] = jnp.zeros_like(acc_ref)

    pred = pred_ref[...].astype(jnp.float32)
    mu = mu_ref[...].astype(jnp.float32)
    sigma = sig_ref[...].astype(jnp.float32)

    diff = pred - mu
    clipped = jnp.where(sigma < jnp.float32(0.1), jnp.float32(1.0), sigma)
    # (diff * (1/clipped))**2 == diff**2 / clipped**2 up to rounding; exact
    # reciprocal keeps the rtol=1e-5 check honest and drops one multiply.
    r = diff * pl.reciprocal(clipped, approx=False)
    contrib = r * r

    if needs_mask:
        row0 = (p * tiles_per_part + j) * block_rows
        is_ragged = row0 + block_rows > valid_rows

        @pl.when(jnp.logical_not(is_ragged))
        def _full():
            acc_ref[...] += contrib

        @pl.when(is_ragged)
        def _ragged():
            rows = jax.lax.broadcasted_iota(jnp.int32, contrib.shape, 0) + row0
            # Keep a select (not a multiply): garbage rows may hold NaN/Inf.
            acc_ref[...] += jnp.where(rows < valid_rows, contrib,
                                      jnp.float32(0.0))
    else:
        acc_ref[...] += contrib

    @pl.when(j == pl.num_programs(1) - 1)
    def _finalize():
        # One sublane-axis reduce per partition; HBM writeback is only (1, L).
        out_ref[...] = jnp.sum(acc_ref[...], axis=0, keepdims=True)


def _pick_block_rows(num_rows, lanes, target_bytes=4 * 1024 * 1024):
    """~4 MiB f32 per input tile; floor of 8 rows to satisfy the (8,128) rule."""
    tm = max(1, target_bytes // (4 * lanes))
    if tm >= num_rows:
        return num_rows                      # full extent: always legal
    return max(8, (tm // 8) * 8)


def custom_mse_loss(predictions, targets, block_rows=None):
    """predictions: (B, C, L); targets: (B, C, 2, L) -> scalar f32 loss."""
    B, C, L = predictions.shape
    assert targets.shape == (B, C, 2, L), targets.shape
    rows = B * C
    total = rows * L

    if L >= _LANE:
        # Path A: copy-free reshapes only; the BlockSpec DMA de-interleaves
        # mu / sigma out of targets (middle dim squeezed).
        lanes = L
        R = rows
        pred_arr = predictions.reshape(rows, L)
        tgt_arr = targets.reshape(rows, 2, L)
        operands = (pred_arr, tgt_arr, tgt_arr)

        def make_in_specs(tile_idx, tm):
            return [
                pl.BlockSpec((tm, lanes),
                             lambda p, j: (tile_idx(p, j), 0)),
                pl.BlockSpec((tm, None, lanes),
                             lambda p, j: (tile_idx(p, j), 0, 0)),
                pl.BlockSpec((tm, None, lanes),
                             lambda p, j: (tile_idx(p, j), 1, 0)),
            ]
    else:
        # Path B (small L): fold rows into lanes so vregs / stores are
        # lane-dense.  The one-time wrapper slice+pad of mu/sigma is accepted
        # here (review item: lane-dense output is the biggest lever at L<128).
        lanes = _LANE
        predf = predictions.reshape(-1)
        mu = targets[:, :, 0, :].reshape(-1)
        sigma = targets[:, :, 1, :].reshape(-1)
        pad = (-total) % lanes
        if pad:
            predf = jnp.pad(predf, (0, pad))
            mu = jnp.pad(mu, (0, pad))
            # Pad sigma with 1.0 so padded elements contribute exactly 0.
            sigma = jnp.pad(sigma, (0, pad), constant_values=1.0)
        R = (total + pad) // lanes
        operands = (predf.reshape(R, lanes), mu.reshape(R, lanes),
                    sigma.reshape(R, lanes))

        def make_in_specs(tile_idx, tm):
            return [
                pl.BlockSpec((tm, lanes), lambda p, j: (tile_idx(p, j), 0))
                for _ in range(3)
            ]

    if block_rows is None:
        tm = _pick_block_rows(R, lanes)
    else:
        tm = min(int(block_rows), R)
        if tm < R:
            tm = max(8, (tm // 8) * 8)

    n_tiles = pl.cdiv(R, tm)

    # Leading "parallel" partition axis: shards rows across v7x's two
    # TensorCores; on 1-TC chips (v5e/v6e) it is just a near-free outer loop.
    num_parts = 2 if n_tiles >= 2 else 1
    tiles_per_part = pl.cdiv(n_tiles, num_parts)
    clamp = num_parts * tiles_per_part > n_tiles
    needs_mask = num_parts * tiles_per_part * tm != R

    def tile_idx(p, j):
        t = p * tiles_per_part + j
        if clamp:
            # Overhang tiles re-read the last valid block; fully masked to 0.
            t = jnp.minimum(t, n_tiles - 1)
        return t

    kernel = functools.partial(
        _mse_tile_kernel,
        block_rows=tm,
        valid_rows=R,
        tiles_per_part=tiles_per_part,
        needs_mask=needs_mask,
    )

    partial_sums = pl.pallas_call(
        kernel,
        out_shape=jax.ShapeDtypeStruct((num_parts, 1, lanes), jnp.float32),
        grid=(num_parts, tiles_per_part),
        in_specs=make_in_specs(tile_idx, tm),
        out_specs=pl.BlockSpec((None, 1, lanes), lambda p, j: (p, 0, 0)),
        scratch_shapes=[pltpu.VMEM((tm, lanes), jnp.float32)],
        compiler_params=pltpu.CompilerParams(
            dimension_semantics=("parallel", "arbitrary"),
            vmem_limit_bytes=48 * 1024 * 1024),
    )(*operands)

    # Tiny (num_parts, 1, lanes) reduce + mean outside the kernel.
    return jnp.sum(partial_sums) / jnp.float32(total)


def _reference_loss(predictions, targets):
    sq = (predictions - targets[:, :, 0, :]) ** 2
    sig = targets[:, :, 1, :]
    clipped = jnp.where(sig < 0.1, jnp.ones_like(sig), sig)
    return jnp.mean(sq / clipped**2)


if __name__ == "__main__":
    key = jax.random.PRNGKey(0)

    # ((B, C, L), block_rows): exercises the lane-folded small-L path,
    # padding, the split-targets path, a ragged multi-tile 2-partition grid,
    # and an L that is >=128 but not a multiple of 128.
    cases = [
        ((2, 4, 16), None),
        ((3, 7, 16), None),
        ((2, 3, 128), None),
        ((4, 5, 128), 8),
        ((2, 4, 192), None),
    ]
    for idx, ((B, C, L), br) in enumerate(cases):
        k1, k2 = jax.random.split(jax.random.fold_in(key, idx))
        predictions = jax.random.normal(k1, (B, C, L), dtype=jnp.float32)
        # targets[:,:,0,:] = target means; targets[:,:,1,:] = sigmas (some
        # below 0.1 so the clipping branch is exercised).
        targets = jax.random.uniform(
            k2, (B, C, 2, L), dtype=jnp.float32, minval=0.0, maxval=1.0)

        loss = jax.block_until_ready(
            custom_mse_loss(predictions, targets, block_rows=br))
        ref = jax.block_until_ready(_reference_loss(predictions, targets))
        assert jnp.allclose(loss, ref, rtol=1e-5, atol=1e-6), (idx, loss, ref)

    print("KERNEL_OK")
</pallas_src>

<mosaic_0001>
module attributes {stable_mosaic.version = 11 : i64} {
  func.func @_mse_tile_kernel(%arg0: i32, %arg1: i32, %arg2: memref<1x128xf32, #tpu.memory_space<vmem>>, %arg3: memref<1x128xf32, #tpu.memory_space<vmem>>, %arg4: memref<1x128xf32, #tpu.memory_space<vmem>>, %arg5: memref<1x1x128xf32, #tpu.memory_space<vmem>>, %arg6: memref<1x128xf32, #tpu.memory_space<vmem>>) attributes {dimension_semantics = [#tpu.dimension_semantics<parallel>, #tpu.dimension_semantics<arbitrary>], iteration_bounds = array<i64: 1, 1>, scalar_prefetch = 0 : i64, scratch_operands = 1 : i64, tpu.core_type = #tpu.core_type<tc>, window_params = [{transform_indices = @transform_0, window_bounds = array<i64: 1, 128>}, {transform_indices = @transform_1, window_bounds = array<i64: 1, 128>}, {transform_indices = @transform_2, window_bounds = array<i64: 1, 128>}, {transform_indices = @transform_3, window_bounds = array<i64: 1, 1, 128>}]} {
    %c0_i32 = arith.constant 0 : i32
    %0 = arith.cmpi eq, %arg1, %c0_i32 : i32
    %1 = arith.extui %0 : i1 to i32
    %c0_i32_0 = arith.constant 0 : i32
    %2 = arith.cmpi ne, %1, %c0_i32_0 : i32
    scf.if %2 {
      %cst_13 = arith.constant 0.000000e+00 : f32
      %20 = vector.broadcast %cst_13 : f32 to vector<1x128xf32>
      %c0_14 = arith.constant 0 : index
      %c0_15 = arith.constant 0 : index
      %21 = vector.load %arg6[%c0_14, %c0_15] : memref<1x128xf32, #tpu.memory_space<vmem>>, vector<1x128xf32>
      tpu.vector_store %arg6[%c0_14, %c0_15], %20 {strides = array<i32>} : memref<1x128xf32, #tpu.memory_space<vmem>>, vector<1x128xf32>,
    } else {
    }
    %c0 = arith.constant 0 : index
    %c0_1 = arith.constant 0 : index
    %3 = vector.load %arg2[%c0, %c0_1] : memref<1x128xf32, #tpu.memory_space<vmem>>, vector<1x128xf32>
    %c0_2 = arith.constant 0 : index
    %c0_3 = arith.constant 0 : index
    %4 = vector.load %arg3[%c0_2, %c0_3] : memref<1x128xf32, #tpu.memory_space<vmem>>, vector<1x128xf32>
    %c0_4 = arith.constant 0 : index
    %c0_5 = arith.constant 0 : index
    %5 = vector.load %arg4[%c0_4, %c0_5] : memref<1x128xf32, #tpu.memory_space<vmem>>, vector<1x128xf32>
    %6 = arith.subf %3, %4 : vector<1x128xf32>
    %cst = arith.constant 1.000000e-01 : f32
    %7 = vector.broadcast %cst : f32 to vector<1x128xf32>
    %8 = arith.cmpf olt, %5, %7 : vector<1x128xf32>
    %cst_6 = arith.constant 1.000000e+00 : f32
    %9 = vector.broadcast %cst_6 : f32 to vector<1x128xf32>
    %10 = arith.select %8, %9, %5 : vector<1x128xi1>, vector<1x128xf32>
    %11 = tpu.reciprocal %10 : vector<1x128xf32> -> vector<1x128xf32>
    %12 = arith.mulf %6, %11 : vector<1x128xf32>
    %13 = arith.mulf %12, %12 : vector<1x128xf32>
    %c0_7 = arith.constant 0 : index
    %c0_8 = arith.constant 0 : index
    %14 = vector.load %arg6[%c0_7, %c0_8] : memref<1x128xf32, #tpu.memory_space<vmem>>, vector<1x128xf32>
    %15 = arith.addf %14, %13 : vector<1x128xf32>
    %c0_9 = arith.constant 0 : index
    %c0_10 = arith.constant 0 : index
    %16 = vector.load %arg6[%c0_9, %c0_10] : memref<1x128xf32, #tpu.memory_space<vmem>>, vector<1x128xf32>
    tpu.vector_store %arg6[%c0_9, %c0_10], %15 {strides = array<i32>} : memref<1x128xf32, #tpu.memory_space<vmem>>, vector<1x128xf32>,
    %c0_i32_11 = arith.constant 0 : i32
    %17 = arith.cmpi eq, %arg1, %c0_i32_11 : i32
    %18 = arith.extui %17 : i1 to i32
    %c0_i32_12 = arith.constant 0 : i32
    %19 = arith.cmpi ne, %18, %c0_i32_12 : i32
    scf.if %19 {
      %c0_13 = arith.constant 0 : index
      %c0_14 = arith.constant 0 : index
      %20 = vector.load %arg6[%c0_13, %c0_14] : memref<1x128xf32, #tpu.memory_space<vmem>>, vector<1x128xf32>
      %cst_15 = arith.constant dense<0.000000e+00> : vector<128xf32>
      %21 = vector.multi_reduction <add>, %20, %cst_15 [0] : vector<1x128xf32> to vector<128xf32>
      %22 = vector.shape_cast %21 : vector<128xf32> to vector<1x128xf32>
      %c0_16 = arith.constant 0 : index
      %c0_17 = arith.constant 0 : index
      %c0_18 = arith.constant 0 : index
      %23 = vector.load %arg5[%c0_16, %c0_17, %c0_18] : memref<1x1x128xf32, #tpu.memory_space<vmem>>, vector<1x1x128xf32>
      %24 = vector.shape_cast %23 : vector<1x1x128xf32> to vector<1x128xf32>
      %25 = vector.shape_cast %22 : vector<1x128xf32> to vector<1x1x128xf32>
      tpu.vector_store %arg5[%c0_16, %c0_17, %c0_18], %25 {strides = array<i32>} : memref<1x1x128xf32, #tpu.memory_space<vmem>>, vector<1x1x128xf32>,
    } else {
    }
    return
  }
  func.func @transform_0(%arg0: i32, %arg1: i32) -> (i32, i32) {
    %c1_i32 = arith.constant 1 : i32
    %0 = arith.muli %arg0, %c1_i32 : i32
    %1 = arith.addi %0, %arg1 : i32
    %c0_i32 = arith.constant 0 : i32
    %c0_i32_0 = arith.constant 0 : i32
    return %1, %c0_i32 : i32, i32
  }
  func.func @transform_1(%arg0: i32, %arg1: i32) -> (i32, i32) {
    %c1_i32 = arith.constant 1 : i32
    %0 = arith.muli %arg0, %c1_i32 : i32
    %1 = arith.addi %0, %arg1 : i32
    %c0_i32 = arith.constant 0 : i32
    %c0_i32_0 = arith.constant 0 : i32
    return %1, %c0_i32 : i32, i32
  }
  func.func @transform_2(%arg0: i32, %arg1: i32) -> (i32, i32) {
    %c1_i32 = arith.constant 1 : i32
    %0 = arith.muli %arg0, %c1_i32 : i32
    %1 = arith.addi %0, %arg1 : i32
    %c0_i32 = arith.constant 0 : i32
    %c0_i32_0 = arith.constant 0 : i32
    return %1, %c0_i32 : i32, i32
  }
  func.func @transform_3(%arg0: i32, %arg1: i32) -> (i32, i32, i32) {
    %c0_i32 = arith.constant 0 : i32
    %c0_i32_0 = arith.constant 0 : i32
    %c0_i32_1 = arith.constant 0 : i32
    return %arg0, %c0_i32, %c0_i32_0 : i32, i32, i32
  }
}

</mosaic_0001>

<llo_original>
// kernel: tpu_custom_call.1
$region0: #{tpu_custom_call.1}
  #allocation0 [shape = 'u32[]', space=smem, size = 0x4, offset = 0x4, fixed_abs, tag = 'smem constant byte address 0x4 - core index']
  #allocation1 [shape = 'u32[144,128]{1,0:T(1,128)}', space=vmem, size = 0x12000, scoped, tag = 'internal scratch']
  #allocation2 [shape = 'f32[1,128]{1,0:T(1,128)}', space=vmem, size = 0x200, scoped, tag = 'scratch operand']
  %s0 = inlined_call_operand.hbm [shape: f32[1,128], index: 0, kind: input, shape index: {}]
  %s1 = inlined_call_operand.vmem [shape: f32[1,128], index: 1, kind: input, shape index: {}]
  %s2 = inlined_call_operand.vmem [shape: f32[1,128], index: 2, kind: input, shape index: {}]
  %s3 = inlined_call_operand.hbm [shape: f32[1,1,128], index: 3, kind: output, shape index: {}]
  %s4 = sld [smem:[#allocation0]]
  $region34: #{tpu_custom_call.1} parent=0
    _
  %s6 = ssub.s32 1, %s4
  %s7 = scalar_select 0, %s6, %s4
  $region1: #{tpu_custom_call.1} parent=0
    #allocation3 [shape = 'u8[512]{0}', space=vmem, size = 0x400, scoped, tag = 'input window, operand 0, single buffered']
    #allocation4 [shape = 's32[1]{0}', space=sflag, size = 0x4, scoped, tag = 'scoped memory for tpu_custom_call.1']
    #allocation5 [shape = 's32[1]{0}', space=sflag, size = 0x4, scoped, tag = 'scoped memory for tpu_custom_call.1']
    #allocation6 [shape = 'u8[512]{0}', space=vmem, size = 0x400, scoped, tag = 'output window, operand 0, single buffered']
    %8 = vsyncpa [#allocation4], 0
    %9 = vsyncpa [#allocation5], 0
    // Predicated region
    $region2: #{tpu_custom_call.1} parent=1 // pred_check
      _
    $region3: #{tpu_custom_call.1} parent=1 // pred_check_branch
      %11 = sbr.rel (0) target = $region5
    $region4: #{tpu_custom_call.1} parent=1 // pred_region
      %s12 = sadd.s32 0, 0
      %s14 = ssub.s32 16, 16
      %15 = vsyncadd [#allocation4], %s14
      %s16 = smul.addr %s12, 16
      %s17 = scalar_lea.hbm %s0, %s16
      %s19 = sshll.u32 [#allocation3], 4
      %s20 = int_to_ptr.vmem [resolvable:$true] %s19
      %22 = dma.hbm_to_vmem [thread:$0]  %s17, 16, %s20, [#allocation4]
    $region5: #{tpu_custom_call.1} parent=1 // pred_fallthru
      _
    // Predicated region
    $region6: #{tpu_custom_call.1} parent=1 // pred_check
      _
    $region7: #{tpu_custom_call.1} parent=1 // pred_check_branch
      %24 = sbr.rel (0) target = $region9
    $region8: #{tpu_custom_call.1} parent=1 // pred_region
      %s25 = sadd.s32 0, 0
      %p26 = scmp.lt.s32.totalorder %s25, 0
      %s27 = scalar_select %p26, %s25, 0
      %s28 = scalar_lea.vmem %s1, %s27
      %s29 = sadd.s32 0, 0
    $region9: #{tpu_custom_call.1} parent=1 // pred_fallthru
      _
    // Predicated region
    $region10: #{tpu_custom_call.1} parent=1 // pred_check
      _
    $region11: #{tpu_custom_call.1} parent=1 // pred_check_branch
      %31 = sbr.rel (0) target = $region13
    $region12: #{tpu_custom_call.1} parent=1 // pred_region
      %s32 = sadd.s32 0, 0
      %p33 = scmp.lt.s32.totalorder %s32, 0
      %s34 = scalar_select %p33, %s32, 0
      %s35 = scalar_lea.vmem %s2, %s34
      %s36 = sadd.s32 0, 0
    $region13: #{tpu_custom_call.1} parent=1 // pred_fallthru
      _
    // Predicated region
    $region14: #{tpu_custom_call.1} parent=1 // pred_check
      _
    $region15: #{tpu_custom_call.1} parent=1 // pred_check_branch
      %38 = sbr.rel (0) target = $region17
    $region16: #{tpu_custom_call.1} parent=1 // pred_region
      %39 = dma.done [#allocation4], 16
    $region17: #{tpu_custom_call.1} parent=1 // pred_fallthru
      _
    %s40 = sadd.s32 0, 0
    %p41 = scmp.lt.s32.totalorder %s40, 0
    %s42 = scalar_select %p41, %s40, 0
    %s43 = scalar_lea.vmem %s1, %s42
    %s44 = sadd.s32 0, 0
    %p45 = scmp.lt.s32.totalorder %s44, 0
    %s46 = scalar_select %p45, %s44, 0
    %s47 = scalar_lea.vmem %s2, %s46
    %s48 = sadd.s32 0, 0
    %s49 = sadd.s32 0, 0
    %p50 = scmp.lt.s32.totalorder %s49, 0
    %s51 = scalar_select %p50, %s49, 0
    %s52 = scalar_lea.vmem %s1, %s51
    %s53 = sadd.s32 0, 0
    %s54 = sadd.s32 0, 0
    %p55 = scmp.lt.s32.totalorder %s54, 0
    %s56 = scalar_select %p55, %s54, 0
    %s57 = scalar_lea.vmem %s2, %s56
    %s58 = sadd.s32 0, 0
    %p59 = scmp.eq.s32.totalorder 0, 0
    // Predicated region
    $region18: #{tpu_custom_call.1} parent=1 // pred_check
      %p60 = pneg %p59
    $region19: #{tpu_custom_call.1} parent=1 // pred_check_branch
      %62 = sbr.rel (%p60) target = $region21
    $region20: #{tpu_custom_call.1} parent=1 // pred_region
      %63 = vst [vmem:[#allocation2] sm:$0x1] 0.0
    $region21: #{tpu_custom_call.1} parent=1 // pred_fallthru
      _
    %v64 = vld [vmem:[#allocation3] sm:$0x1]
    %v65 = vld [vmem:[%s52] sm:$0x1]
    %v66 = vld [vmem:[%s57] sm:$0x1]
    %v67 = vsub.f32 %v64, %v65
    %vm68 = vcmp.lt.f32.partialorder %v66, 0.1
    %v69 = vsel %vm68, 1.0, %v66
    %v70 = vrcp.pop %v69
    %v71 = vmul.f32 %v67, %v70
    %v72 = vmul.f32 %v71, %v71
    %v73 = vld [vmem:[#allocation2] sm:$0x1]
    %v74 = vadd.f32 %v73, %v72
    %75 = vst [vmem:[#allocation2] sm:$0x1] %v74
    // Predicated region
    $region22: #{tpu_custom_call.1} parent=1 // pred_check
      %p76 = pneg %p59
    $region23: #{tpu_custom_call.1} parent=1 // pred_check_branch
      %78 = sbr.rel (%p76) target = $region25
    $region24: #{tpu_custom_call.1} parent=1 // pred_region
      %v79 = vld [vmem:[#allocation2] sm:$0x1]
      %v80 = vadd.f32 %v79, 0.0
      %81 = vst [vmem:[#allocation6] sm:$0x1] %v80
    $region25: #{tpu_custom_call.1} parent=1 // pred_fallthru
      _
    // Predicated region
    $region26: #{tpu_custom_call.1} parent=1 // pred_check
      _
    $region27: #{tpu_custom_call.1} parent=1 // pred_check_branch
      %83 = sbr.rel (0) target = $region29
    $region28: #{tpu_custom_call.1} parent=1 // pred_region
      %s85 = ssub.s32 16, 16
      %86 = vsyncadd [#allocation5], %s85
      %s88 = sshll.u32 [#allocation6], 4
      %s89 = int_to_ptr.vmem [resolvable:$true] %s88
      %91 = dma.vmem_to_hbm [thread:$0]  %s89, 16, %s3, [#allocation5]
    $region29: #{tpu_custom_call.1} parent=1 // pred_fallthru
      _
    // Predicated region
    $region30: #{tpu_custom_call.1} parent=1 // pred_check
      _
    $region31: #{tpu_custom_call.1} parent=1 // pred_check_branch
      %93 = sbr.rel (0) target = $region33
    $region32: #{tpu_custom_call.1} parent=1 // pred_region
      %94 = dma.done [#allocation5], 16
    $region33: #{tpu_custom_call.1} parent=1 // pred_fallthru
      _
    %95 = vsyncpa [#allocation4], 1
    %96 = vsyncpa [#allocation5], 1

</llo_original>
